<compile_context>
chip_gen: v7x
topology: tpu7x:2x2x1
jax: 0.10.0
libtpu: 0.0.40
codegen_flags: <defaults>
</compile_context>

<pallas_src>
import jax
import jax.numpy as jnp
import numpy as np
from jax.experimental import pallas as pl
from jax.experimental.pallas import tpu as pltpu

N_FT_MUL = 2.0
MUL_HIDDEN = 2              # RecModel.mul_hidden
SIZE_HIDDEN_LIN = 17 * 1000

_VMEM = pl.BlockSpec(memory_space=pltpu.MemorySpace.VMEM)
_SMEM = pl.BlockSpec(memory_space=pltpu.MemorySpace.SMEM)


def _mm_f32(a, b):
    # Full-f32 matmul for host-side reference / one-time weight folding.
    return jnp.matmul(a, b, precision=jax.lax.Precision.HIGHEST)


# ------------- ConvModelNoReduction: Conv1d(k=3, pad=1) + ReLU kernel --------
def conv_relu_kernel(xp_ref, w_ref, b_ref, o_ref):
    # xp_ref: ((L+2)*B, Cin) time-major padded rows (row = t*B + b)
    # w_ref : (3*Cin, Cout) tap-major im2col weight     b_ref: (1, Cout)
    # o_ref : (L*B, Cout) time-major
    n, _ = o_ref.shape
    cin = xp_ref.shape[1]
    b = (xp_ref.shape[0] - n) // 2          # batch size (1 pad step each side)
    xp = xp_ref[...]
    w = w_ref[...]
    # im2col built in-kernel: three shifted static views, K=Cin MXU accumulates.
    acc = jnp.dot(xp[0:n, :], w[0:cin, :], preferred_element_type=jnp.float32)
    acc = acc + jnp.dot(xp[b:b + n, :], w[cin:2 * cin, :],
                        preferred_element_type=jnp.float32)
    acc = acc + jnp.dot(xp[2 * b:2 * b + n, :], w[2 * cin:3 * cin, :],
                        preferred_element_type=jnp.float32)
    o_ref[...] = jnp.maximum(acc + b_ref[...], 0.0).astype(o_ref.dtype)


@jax.jit
def conv_model_no_reduction(x_ncl, conv_w, conv_b):
    """ConvModelNoReduction.forward: NCL in -> NCL out, one grid-free kernel."""
    B, Cin, L = x_ncl.shape
    Cout = conv_w.shape[0]
    # Time-major padded rows; all prep fuses under this jit (no HBM cols slab).
    x_tbc = jnp.transpose(x_ncl, (2, 0, 1))                      # (L, B, Cin)
    xp = jnp.pad(x_tbc, ((1, 1), (0, 0), (0, 0))).reshape((L + 2) * B, Cin)
    w_col = jnp.transpose(conv_w, (2, 1, 0)).reshape(3 * Cin, Cout)
    flops = 2 * (L * B) * (3 * Cin) * Cout
    bytes_acc = 4 * ((L + 2) * B * Cin + 3 * Cin * Cout + Cout + L * B * Cout)
    y = pl.pallas_call(
        conv_relu_kernel,
        out_shape=jax.ShapeDtypeStruct((L * B, Cout), jnp.float32),
        in_specs=[_VMEM, _VMEM, _VMEM],
        out_specs=_VMEM,
        compiler_params=pltpu.CompilerParams(),
        cost_estimate=pl.CostEstimate(flops=flops, transcendentals=0,
                                      bytes_accessed=bytes_acc),
    )(xp, w_col, conv_b.reshape(1, Cout))
    return jnp.transpose(y.reshape(L, B, Cout), (1, 2, 0))       # back to NCL


# --------- Fused hybrid kernel: conv+ReLU -> LSTM -> folded linear head ------
def fused_hybrid_kernel(xp_ref, wc_ref, bc_ref, wih_ref, whh_ref, bl_ref,
                        h0_ref, c0_ref, wh_ref, bh_ref, o_ref):
    # xp_ref : ((L+2)*B, Cin) time-major padded input rows
    # wc_ref : (3*Cin, Cout)   bc_ref : (1, Cout)
    # wih_ref: (Cout, 4H)      whh_ref: (H, 4H)     bl_ref: (1, 4H)
    # h0/c0  : (B, H)          wh_ref : (1, H) folded head
    # bh_ref : (1,) folded head bias, SMEM scalar
    # o_ref  : (B, L)
    B, L = o_ref.shape
    H = h0_ref.shape[1]
    Cin = xp_ref.shape[1]
    n = L * B

    # (1) Conv1d(k=3, pad=1) + ReLU; im2col built in-kernel from padded rows.
    xp = xp_ref[...]
    wc = wc_ref[...]
    acc = jnp.dot(xp[0:n, :], wc[0:Cin, :], preferred_element_type=jnp.float32)
    acc = acc + jnp.dot(xp[B:B + n, :], wc[Cin:2 * Cin, :],
                        preferred_element_type=jnp.float32)
    acc = acc + jnp.dot(xp[2 * B:2 * B + n, :], wc[2 * Cin:3 * Cin, :],
                        preferred_element_type=jnp.float32)
    conv = jnp.maximum(acc + bc_ref[...], 0.0)                   # (L*B, Cout)

    # (2) LSTM input projection hoisted out of the recurrence: one matmul for
    #     all timesteps; only h @ W_hh stays on the serial critical path.
    xproj = (jnp.dot(conv, wih_ref[...], preferred_element_type=jnp.float32)
             + bl_ref[...])                                      # (L*B, 4H)

    # (3) Statically unrolled recurrence (L is small & static).
    # TODO(synk): optionally hold W_hh in the MXU across steps via
    #   pltpu.matmul_push_rhs/matmul_acc_lhs (or a VPU broadcast-FMA on v5e);
    #   relying on Mosaic to hoist the loop-invariant RHS push for now.
    whh = whh_ref[...]
    h = h0_ref[...]
    c = c0_ref[...]
    hs = []
    for t in range(L):
        gates = xproj[t * B:(t + 1) * B, :] + jnp.dot(
            h, whh, preferred_element_type=jnp.float32)          # (B, 4H)
        sg = jax.nn.sigmoid(gates)           # one full-width EUP pass
        th = jnp.tanh(gates)                 # one full-width EUP pass
        i_g = sg[:, 0 * H:1 * H]             # PyTorch gate order [i, f, g, o]
        f_g = sg[:, 1 * H:2 * H]
        g_g = th[:, 2 * H:3 * H]
        o_g = sg[:, 3 * H:4 * H]
        c = f_g * c + i_g * g_g
        h = o_g * jnp.tanh(c)
        hs.append(h)                         # stays in vregs; no per-step store

    # (4) Folded linear head applied ONCE after the loop: single VPU multiply +
    #     one lane reduction + one lane-dense (B, L) store.
    h_all = jnp.stack(hs, axis=1)                                # (B, L, H)
    out = jnp.sum(h_all * wh_ref[...], axis=-1)                  # (B, L)
    o_ref[...] = (out + bh_ref[0]).astype(o_ref.dtype)


def prepare_kernel_params(params):
    """One-time weight layout + head folding (NOT on the per-call path)."""
    Cout, Cin, _ = params["conv_w"].shape
    H = params["w_hh"].shape[1]
    # Fold Linear(H->17000) -> Dropout(eval) -> Linear(17000->1) into (1,H)+(1,)
    # in f32 HIGHEST precision (summation-order change vs reference is benign).
    w_eff = _mm_f32(params["lin1_w"].T, params["lin2_w"].T)          # (H, 1)
    b_eff = _mm_f32(params["lin1_b"], params["lin2_w"].T) + params["lin2_b"]
    return dict(
        conv_w_col=jnp.transpose(params["conv_w"], (2, 1, 0)).reshape(3 * Cin, Cout),
        conv_b_row=params["conv_b"].reshape(1, Cout),
        w_ih_t=params["w_ih"].T,                                     # (Cout, 4H)
        w_hh_t=params["w_hh"].T,                                     # (H, 4H)
        b_lstm=(params["b_ih"] + params["b_hh"]).reshape(1, -1),     # (1, 4H)
        head_w=w_eff.reshape(1, H),                                  # (1, H)
        head_b=b_eff.reshape(1),                                     # (1,) SMEM
    )


@jax.jit
def hybrid_forward(x_ncl, kparams, h0, c0):
    B, Cin, L = x_ncl.shape
    Cout = kparams["conv_w_col"].shape[1]
    H = h0.shape[-1]
    # Time-major padded rows so the LSTM reads contiguous static slices; the
    # pad/transpose prep fuses with the pallas_call under this jit.
    x_tbc = jnp.transpose(x_ncl, (2, 0, 1))                          # (L, B, Cin)
    xp = jnp.pad(x_tbc, ((1, 1), (0, 0), (0, 0))).reshape((L + 2) * B, Cin)
    flops = 2 * (L * B) * (3 * Cin * Cout + Cout * 4 * H + H * 4 * H + H)
    transc = (L * B) * 9 * H
    bytes_acc = 4 * ((L + 2) * B * Cin + 3 * Cin * Cout + Cout + Cout * 4 * H
                     + H * 4 * H + 4 * H + 2 * B * H + H + 1 + B * L)
    # TODO(synk): on v7x (2 TCs/chip) grid this call over B with
    #   dimension_semantics=("parallel",); kept grid-free here since v5e/v6e
    #   have a single TensorCore and the extra grid step is pure overhead.
    return pl.pallas_call(
        fused_hybrid_kernel,
        out_shape=jax.ShapeDtypeStruct((B, L), jnp.float32),
        in_specs=[_VMEM] * 9 + [_SMEM],
        out_specs=_VMEM,
        compiler_params=pltpu.CompilerParams(),
        cost_estimate=pl.CostEstimate(flops=flops, transcendentals=transc,
                                      bytes_accessed=bytes_acc),
    )(xp, kparams["conv_w_col"], kparams["conv_b_row"],
      kparams["w_ih_t"], kparams["w_hh_t"], kparams["b_lstm"],
      h0, c0, kparams["head_w"], kparams["head_b"])


# -------------------------- Parameter initialization -------------------------
def init_params(key, in_channel):
    cin = in_channel
    cout = int(cin * N_FT_MUL)            # conv output channels
    hid = cout * MUL_HIDDEN               # LSTM hidden size
    ks = jax.random.split(key, 10)

    def u(k, shape, fan):
        bound = 1.0 / np.sqrt(fan)
        return jax.random.uniform(k, shape, jnp.float32, -bound, bound)

    return dict(
        conv_w=u(ks[0], (cout, cin, 3), cin * 3),        # PyTorch (oc, ic, k)
        conv_b=u(ks[1], (cout,), cin * 3),
        w_ih=u(ks[2], (4 * hid, cout), hid),             # PyTorch (4H, in)
        w_hh=u(ks[3], (4 * hid, hid), hid),
        b_ih=u(ks[4], (4 * hid,), hid),
        b_hh=u(ks[5], (4 * hid,), hid),
        lin1_w=u(ks[6], (SIZE_HIDDEN_LIN, hid), hid),    # PyTorch (out, in)
        lin1_b=u(ks[7], (SIZE_HIDDEN_LIN,), hid),
        lin2_w=u(ks[8], (1, SIZE_HIDDEN_LIN), SIZE_HIDDEN_LIN),
        lin2_b=u(ks[9], (1,), SIZE_HIDDEN_LIN),
    )


# ------------------------------ Pure-JAX references --------------------------
def reference_conv_ncl(x_ncl, conv_w, conv_b):
    B, Cin, L = x_ncl.shape
    xt = jnp.transpose(x_ncl, (0, 2, 1))
    xp = jnp.pad(xt, ((0, 0), (1, 1), (0, 0)))
    w = jnp.transpose(conv_w, (2, 1, 0))
    y = sum(_mm_f32(xp[:, k:k + L, :], w[k]) for k in range(3)) + conv_b
    return jnp.transpose(jnp.maximum(y, 0.0), (0, 2, 1))


def reference_hybrid(x_ncl, params, h0, c0):
    B, Cin, L = x_ncl.shape
    xt = jnp.transpose(x_ncl, (0, 2, 1))
    xp = jnp.pad(xt, ((0, 0), (1, 1), (0, 0)))
    w = jnp.transpose(params["conv_w"], (2, 1, 0))
    y = sum(_mm_f32(xp[:, k:k + L, :], w[k]) for k in range(3)) + params["conv_b"]
    y = jnp.maximum(y, 0.0)
    H = h0.shape[-1]
    wih, whh = params["w_ih"].T, params["w_hh"].T
    b = params["b_ih"] + params["b_hh"]

    def step(carry, x_t):
        h, c = carry
        g = _mm_f32(x_t, wih) + _mm_f32(h, whh) + b
        i = jax.nn.sigmoid(g[:, :H])
        f = jax.nn.sigmoid(g[:, H:2 * H])
        gg = jnp.tanh(g[:, 2 * H:3 * H])
        o = jax.nn.sigmoid(g[:, 3 * H:])
        c = f * c + i * gg
        h = o * jnp.tanh(c)
        return (h, c), h

    _, hs = jax.lax.scan(step, (h0, c0), jnp.transpose(y, (1, 0, 2)))
    feat = jnp.transpose(hs, (1, 0, 2)).reshape(B * L, -1)
    out = _mm_f32(_mm_f32(feat, params["lin1_w"].T) + params["lin1_b"],
                  params["lin2_w"].T) + params["lin2_b"]
    return out.reshape(B, -1)


if __name__ == "__main__":
    in_channel, batch, seq_len = 4, 2, 16
    hid = int(in_channel * N_FT_MUL) * MUL_HIDDEN   # LSTM hidden = 16

    key = jax.random.PRNGKey(0)
    kx, kh, kc, kp = jax.random.split(key, 4)
    x = jax.random.normal(kx, (batch, in_channel, seq_len), jnp.float32)  # NCL
    # Deterministic stand-ins for RecModel.__init_hiddens (torch.randn):
    h0 = jax.random.normal(kh, (batch, hid), jnp.float32)
    c0 = jax.random.normal(kc, (batch, hid), jnp.float32)
    params = init_params(kp, in_channel)
    kparams = prepare_kernel_params(params)          # one-time fold, off hot path

    # (1) ConvModelNoReduction forward (the spec module): NCL -> NCL.
    conv_out = jax.block_until_ready(
        conv_model_no_reduction(x, params["conv_w"], params["conv_b"]))
    conv_ref = jax.block_until_ready(
        reference_conv_ncl(x, params["conv_w"], params["conv_b"]))
    assert conv_out.shape == (batch, int(in_channel * N_FT_MUL), seq_len), conv_out.shape
    np.testing.assert_allclose(np.asarray(conv_out), np.asarray(conv_ref),
                               rtol=2e-3, atol=2e-3)

    # (2) Fully fused hybrid forward (conv -> LSTM -> folded linear head).
    out = jax.block_until_ready(hybrid_forward(x, kparams, h0, c0))
    ref = jax.block_until_ready(reference_hybrid(x, params, h0, c0))
    assert out.shape == (batch, seq_len), out.shape
    np.testing.assert_allclose(np.asarray(out), np.asarray(ref),
                               rtol=2e-3, atol=2e-3)
    print("KERNEL_OK")
</pallas_src>

<mosaic_0001>
module attributes {stable_mosaic.version = 11 : i64} {
  func.func @conv_relu_kernel(%arg0: memref<36x4xf32, #tpu.memory_space<vmem>>, %arg1: memref<12x8xf32, #tpu.memory_space<vmem>>, %arg2: memref<1x8xf32, #tpu.memory_space<vmem>>, %arg3: memref<32x8xf32, #tpu.memory_space<vmem>>) attributes {dimension_semantics = [], scalar_prefetch = 0 : i64, scratch_operands = 0 : i64, tpu.core_type = #tpu.core_type<tc>} {
    %c0 = arith.constant 0 : index
    %c0_0 = arith.constant 0 : index
    %0 = vector.load %arg0[%c0, %c0_0] : memref<36x4xf32, #tpu.memory_space<vmem>>, vector<36x4xf32>
    %c0_1 = arith.constant 0 : index
    %c0_2 = arith.constant 0 : index
    %1 = vector.load %arg1[%c0_1, %c0_2] : memref<12x8xf32, #tpu.memory_space<vmem>>, vector<12x8xf32>
    %2 = vector.extract_strided_slice %0 {offsets = [0, 0], sizes = [32, 4], strides = [1, 1]} : vector<36x4xf32> to vector<32x4xf32>
    %3 = vector.extract_strided_slice %1 {offsets = [0, 0], sizes = [4, 8], strides = [1, 1]} : vector<12x8xf32> to vector<4x8xf32>
    %cst = arith.constant dense<0.000000e+00> : vector<32x8xf32>
    %4 = tpu.matmul %2, %3, %cst {dimension_numbers = #tpu.dot_dimension_numbers<[1], [0], [0], [1], [0, 0, 1, 1], [], []>} : vector<32x4xf32>, vector<4x8xf32>, vector<32x8xf32> -> vector<32x8xf32>
    %5 = vector.extract_strided_slice %0 {offsets = [2, 0], sizes = [32, 4], strides = [1, 1]} : vector<36x4xf32> to vector<32x4xf32>
    %6 = vector.extract_strided_slice %1 {offsets = [4, 0], sizes = [4, 8], strides = [1, 1]} : vector<12x8xf32> to vector<4x8xf32>
    %cst_3 = arith.constant dense<0.000000e+00> : vector<32x8xf32>
    %7 = tpu.matmul %5, %6, %cst_3 {dimension_numbers = #tpu.dot_dimension_numbers<[1], [0], [0], [1], [0, 0, 1, 1], [], []>} : vector<32x4xf32>, vector<4x8xf32>, vector<32x8xf32> -> vector<32x8xf32>
    %8 = arith.addf %4, %7 : vector<32x8xf32>
    %9 = vector.extract_strided_slice %0 {offsets = [4, 0], sizes = [32, 4], strides = [1, 1]} : vector<36x4xf32> to vector<32x4xf32>
    %10 = vector.extract_strided_slice %1 {offsets = [8, 0], sizes = [4, 8], strides = [1, 1]} : vector<12x8xf32> to vector<4x8xf32>
    %cst_4 = arith.constant dense<0.000000e+00> : vector<32x8xf32>
    %11 = tpu.matmul %9, %10, %cst_4 {dimension_numbers = #tpu.dot_dimension_numbers<[1], [0], [0], [1], [0, 0, 1, 1], [], []>} : vector<32x4xf32>, vector<4x8xf32>, vector<32x8xf32> -> vector<32x8xf32>
    %12 = arith.addf %8, %11 : vector<32x8xf32>
    %c0_5 = arith.constant 0 : index
    %c0_6 = arith.constant 0 : index
    %13 = vector.load %arg2[%c0_5, %c0_6] : memref<1x8xf32, #tpu.memory_space<vmem>>, vector<1x8xf32>
    %14 = vector.broadcast %13 : vector<1x8xf32> to vector<32x8xf32>
    %15 = arith.addf %12, %14 : vector<32x8xf32>
    %cst_7 = arith.constant 0.000000e+00 : f32
    %16 = vector.broadcast %cst_7 : f32 to vector<32x8xf32>
    %17 = arith.maximumf %15, %16 : vector<32x8xf32>
    %c0_8 = arith.constant 0 : index
    %c0_9 = arith.constant 0 : index
    %18 = vector.load %arg3[%c0_8, %c0_9] : memref<32x8xf32, #tpu.memory_space<vmem>>, vector<32x8xf32>
    tpu.vector_store %arg3[%c0_8, %c0_9], %17 {strides = array<i32>} : memref<32x8xf32, #tpu.memory_space<vmem>>, vector<32x8xf32>,
    return
  }
}

</mosaic_0001>

<llo_original>
// kernel: conv_model_no_reduction.1
$region0: #{conv_model_no_reduction.1}
  #allocation0 [shape = 'u32[]', space=smem, size = 0x4, offset = 0x4, fixed_abs, tag = 'smem constant byte address 0x4 - core index']
  #allocation1 [shape = 'u32[144,128]{1,0:T(1,128)}', space=vmem, size = 0x12000, scoped, tag = 'internal scratch']
  %s0 = inlined_call_operand.vmem [shape: f32[36,4], index: 0, kind: input, shape index: {}]
  %s1 = inlined_call_operand.vmem [shape: f32[12,8], index: 1, kind: input, shape index: {}]
  %s2 = inlined_call_operand.vmem [shape: f32[1,8], index: 2, kind: input, shape index: {}]
  %s3 = inlined_call_operand.vmem [shape: f32[32,8], index: 3, kind: output, shape index: {}]
  %s4 = sld [smem:[#allocation0]]
  $region22: #{conv_model_no_reduction.1} parent=0
    _
  %s6 = ssub.s32 1, %s4
  %s7 = scalar_select 0, %s6, %s4
  // Predicated region
  $region2: #{conv_model_no_reduction.1} parent=0 // pred_check
    _
  $region3: #{conv_model_no_reduction.1} parent=0 // pred_check_branch
    %9 = sbr.rel (0) target = $region5
  $region4: #{conv_model_no_reduction.1} parent=0 // pred_region
    _
  $region5: #{conv_model_no_reduction.1} parent=0 // pred_fallthru
    _
  // Predicated region
  $region6: #{conv_model_no_reduction.1} parent=0 // pred_check
    _
  $region7: #{conv_model_no_reduction.1} parent=0 // pred_check_branch
    %11 = sbr.rel (0) target = $region9
  $region8: #{conv_model_no_reduction.1} parent=0 // pred_region
    _
  $region9: #{conv_model_no_reduction.1} parent=0 // pred_fallthru
    _
  // Predicated region
  $region10: #{conv_model_no_reduction.1} parent=0 // pred_check
    _
  $region11: #{conv_model_no_reduction.1} parent=0 // pred_check_branch
    %13 = sbr.rel (0) target = $region13
  $region12: #{conv_model_no_reduction.1} parent=0 // pred_region
    _
  $region13: #{conv_model_no_reduction.1} parent=0 // pred_fallthru
    _
  %v14 = vld [vmem:[%s0] sm:$0xff]
  %v15 = vld [vmem:[%s0 + $0x8] sm:$0xff]
  %v16 = vld [vmem:[%s0 + $0x10] sm:$0xff]
  %v17 = vld [vmem:[%s0 + $0x18] sm:$0xff]
  %v18 = vld [vmem:[%s0 + $0x20] sm:$0xf]
  %v19 = vld [vmem:[%s1] sm:$0xff]
  %v20 = vld [vmem:[%s1 + $0x8] sm:$0xf]
  %vm26 = vcmask 1045504
  %v27 = vrot.slane %v14, 2
  %v28 = vrot.slane %v15, 2
  %v29 = vsel %vm26, %v27, %v28
  %v30 = vrot.slane %v16, 2
  %v31 = vsel %vm26, %v28, %v30
  %v32 = vrot.slane %v17, 2
  %v33 = vsel %vm26, %v30, %v32
  %v34 = vrot.slane %v18, 2
  %v35 = vsel %vm26, %v32, %v34
  %v37 = vrot.slane %v19, 4
  %vm38 = vcmask 31744
  %v39 = vsel %vm38, %v29, 0
  %v41 = vsel %vm38, %v31, 0
  %v43 = vsel %vm38, %v33, 0
  %v45 = vsel %vm38, %v35, 0
  %vm47 = vcmask 1043456
  %v48 = vsel %vm47, %v37, 0
  %50 = vmatprep.subr.mxu0 0.0
  %51 = vmatpush1.msra.mxu0 %v48
  %52 = vmatprep.subr.mxu0 0.0
  %53 = vmatpush1.msra.mxu0 0.0
  %54 = vmatprep.subr.mxu0 0.0
  %55 = vmatpush1.msra.mxu0 0.0
  %56 = vmatprep.subr.mxu0 0.0
  %57 = vmatpush1.msra.mxu0 0.0
  %58 = vmatprep.subr.mxu0 0.0
  %59 = vmatpush1.msra.mxu0 0.0
  %60 = vmatprep.subr.mxu0 0.0
  %61 = vmatpush1.msra.mxu0 0.0
  %62 = vmatprep.subr.mxu0 0.0
  %63 = vmatpush1.msra.mxu0 0.0
  %64 = vmatprep.subr.mxu0 0.0
  %65 = vmatpush1.msra.mxu0 0.0
  %66 = vmatprep.subr.mxu0 0.0
  %67 = vmatpush1.msra.mxu0 0.0
  %68 = vmatprep.subr.mxu0 0.0
  %69 = vmatpush1.msra.mxu0 0.0
  %70 = vmatprep.subr.mxu0 0.0
  %71 = vmatpush1.msra.mxu0 0.0
  %72 = vmatprep.subr.mxu0 0.0
  %73 = vmatpush1.msra.mxu0 0.0
  %74 = vmatprep.subr.mxu0 0.0
  %75 = vmatpush1.msra.mxu0 0.0
  %76 = vmatprep.subr.mxu0 0.0
  %77 = vmatpush1.msra.mxu0 0.0
  %78 = vmatprep.subr.mxu0 0.0
  %79 = vmatpush1.msra.mxu0 0.0
  %80 = vmatprep.subr.mxu0 0.0
  %81 = vmatpush1.msra.mxu0 0.0
  %82 = vmatprep.subr.mxu0 0.0
  %83 = vmatpush1.msra.mxu0 0.0
  %84 = vmatprep.subr.mxu0 0.0
  %85 = vmatpush1.msra.mxu0 0.0
  %86 = vmatprep.subr.mxu0 0.0
  %87 = vmatpush1.msra.mxu0 0.0
  %88 = vmatprep.subr.mxu0 0.0
  %89 = vmatpush1.msra.mxu0 0.0
  %90 = vmatprep.subr.mxu0 0.0
  %91 = vmatpush1.msra.mxu0 0.0
  %92 = vmatprep.subr.mxu0 0.0
  %93 = vmatpush1.msra.mxu0 0.0
  %94 = vmatprep.subr.mxu0 0.0
  %95 = vmatpush1.msra.mxu0 0.0
  %96 = vmatprep.subr.mxu0 0.0
  %97 = vmatpush1.msra.mxu0 0.0
  %98 = vmatprep.subr.mxu0 0.0
  %99 = vmatpush1.msra.mxu0 0.0
  %100 = vmatprep.subr.mxu0 0.0
  %101 = vmatpush1.msra.mxu0 0.0
  %102 = vmatprep.subr.mxu0 0.0
  %103 = vmatpush1.msra.mxu0 0.0
  %104 = vmatprep.subr.mxu0 0.0
  %105 = vmatpush1.msra.mxu0 0.0
  %106 = vmatprep.subr.mxu0 0.0
  %107 = vmatpush1.msra.mxu0 0.0
  %108 = vmatprep.subr.mxu0 0.0
  %109 = vmatpush1.msra.mxu0 0.0
  %110 = vmatprep.subr.mxu0 0.0
  %111 = vmatpush1.msra.mxu0 0.0
  %112 = vmatprep.subr.mxu0 0.0
  %113 = vmatpush1.msra.mxu0 0.0
  %114 = vmatprep.mubr.f32.mxu0 0.0
  %115 = vmatmul.mubr.f32.gmra.mrb[0].mxu0 %v39
  %v116 = vpop.f32.mrb[0].mxu0
  %v117 = vadd.f32 0.0, %v116
  %v118 = vpop.f32.mrb[0].mxu0
  %119 = vmatprep.mubr.f32.mxu0 0.0
  %120 = vmatmul.mubr.f32.gmra.mrb[0].mxu0 %v41
  %v121 = vpop.f32.mrb[0].mxu0
  %v122 = vadd.f32 0.0, %v121
  %v123 = vpop.f32.mrb[0].mxu0
  %124 = vmatprep.mubr.f32.mxu0 0.0
  %125 = vmatmul.mubr.f32.gmra.mrb[0].mxu0 %v43
  %v126 = vpop.f32.mrb[0].mxu0
  %v127 = vadd.f32 0.0, %v126
  %v128 = vpop.f32.mrb[0].mxu0
  %129 = vmatprep.mubr.f32.mxu0 0.0
  %130 = vmatmul.mubr.f32.gmra.mrb[0].mxu0 %v45
  %v131 = vpop.f32.mrb[0].mxu0
  %v132 = vadd.f32 0.0, %v131
  %v133 = vpop.f32.mrb[0].mxu0
  %134 = vdwg.mxu0
  %v135 = vsel %vm38, %v14, 0
  %v137 = vsel %vm38, %v15, 0
  %v139 = vsel %vm38, %v16, 0
  %v141 = vsel %vm38, %v17, 0
  %v143 = vsel %vm47, %v19, 0
  %145 = vmatprep.subr.mxu0 0.0
  %146 = vmatpush1.msra.mxu0 %v143
  %147 = vmatprep.subr.mxu0 0.0
  %148 = vmatpush1.msra.mxu0 0.0
  %149 = vmatprep.subr.mxu0 0.0
  %150 = vmatpush1.msra.mxu0 0.0
  %151 = vmatprep.subr.mxu0 0.0
  %152 = vmatpush1.msra.mxu0 0.0
  %153 = vmatprep.subr.mxu0 0.0
  %154 = vmatpush1.msra.mxu0 0.0
  %155 = vmatprep.subr.mxu0 0.0
  %156 = vmatpush1.msra.mxu0 0.0
  %157 = vmatprep.subr.mxu0 0.0
  %158 = vmatpush1.msra.mxu0 0.0
  %159 = vmatprep.subr.mxu0 0.0
  %160 = vmatpush1.msra.mxu0 0.0
  %161 = vmatprep.subr.mxu0 0.0
  %162 = vmatpush1.msra.mxu0 0.0
  %163 = vmatprep.subr.mxu0 0.0
  %164 = vmatpush1.msra.mxu0 0.0
  %165 = vmatprep.subr.mxu0 0.0
  %166 = vmatpush1.msra.mxu0 0.0
  %167 = vmatprep.subr.mxu0 0.0
  %168 = vmatpush1.msra.mxu0 0.0
  %169 = vmatprep.subr.mxu0 0.0
  %170 = vmatpush1.msra.mxu0 0.0
  %171 = vmatprep.subr.mxu0 0.0
  %172 = vmatpush1.msra.mxu0 0.0
  %173 = vmatprep.subr.mxu0 0.0
  %174 = vmatpush1.msra.mxu0 0.0
  %175 = vmatprep.subr.mxu0 0.0
  %176 = vmatpush1.msra.mxu0 0.0
  %177 = vmatprep.subr.mxu0 0.0
  %178 = vmatpush1.msra.mxu0 0.0
  %179 = vmatprep.subr.mxu0 0.0
  %180 = vmatpush1.msra.mxu0 0.0
  %181 = vmatprep.subr.mxu0 0.0
  %182 = vmatpush1.msra.mxu0 0.0
  %183 = vmatprep.subr.mxu0 0.0
  %184 = vmatpush1.msra.mxu0 0.0
  %185 = vmatprep.subr.mxu0 0.0
  %186 = vmatpush1.msra.mxu0 0.0
  %187 = vmatprep.subr.mxu0 0.0
  %188 = vmatpush1.msra.mxu0 0.0
  %189 = vmatprep.subr.mxu0 0.0
  %190 = vmatpush1.msra.mxu0 0.0
  %191 = vmatprep.subr.mxu0 0.0
  %192 = vmatpush1.msra.mxu0 0.0
  %193 = vmatprep.subr.mxu0 0.0
  %194 = vmatpush1.msra.mxu0 0.0
  %195 = vmatprep.subr.mxu0 0.0
  %196 = vmatpush1.msra.mxu0 0.0
  %197 = vmatprep.subr.mxu0 0.0
  %198 = vmatpush1.msra.mxu0 0.0
  %199 = vmatprep.subr.mxu0 0.0
  %200 = vmatpush1.msra.mxu0 0.0
  %201 = vmatprep.subr.mxu0 0.0
  %202 = vmatpush1.msra.mxu0 0.0
  %203 = vmatprep.subr.mxu0 0.0
  %204 = vmatpush1.msra.mxu0 0.0
  %205 = vmatprep.subr.mxu0 0.0
  %206 = vmatpush1.msra.mxu0 0.0
  %207 = vmatprep.subr.mxu0 0.0
  %208 = vmatpush1.msra.mxu0 0.0
  %209 = vmatprep.mubr.f32.mxu0 0.0
  %210 = vmatmul.mubr.f32.gmra.mrb[0].mxu0 %v135
  %v211 = vpop.f32.mrb[0].mxu0
  %v212 = vadd.f32 %v117, %v211
  %v213 = vpop.f32.mrb[0].mxu0
  %214 = vmatprep.mubr.f32.mxu0 0.0
  %215 = vmatmul.mubr.f32.gmra.mrb[0].mxu0 %v137
  %v216 = vpop.f32.mrb[0].mxu0
  %v217 = vadd.f32 %v122, %v216
  %v218 = vpop.f32.mrb[0].mxu0
  %219 = vmatprep.mubr.f32.mxu0 0.0
  %220 = vmatmul.mubr.f32.gmra.mrb[0].mxu0 %v139
  %v221 = vpop.f32.mrb[0].mxu0
  %v222 = vadd.f32 %v127, %v221
  %v223 = vpop.f32.mrb[0].mxu0
  %224 = vmatprep.mubr.f32.mxu0 0.0
  %225 = vmatmul.mubr.f32.gmra.mrb[0].mxu0 %v141
  %v226 = vpop.f32.mrb[0].mxu0
  %v227 = vadd.f32 %v132, %v226
  %v228 = vpop.f32.mrb[0].mxu0
  %229 = vdwg.mxu0
  %v230 = vrot.slane %v14, 4
  %v231 = vrot.slane %v15, 4
  %v232 = vsel %vm47, %v230, %v231
  %v233 = vrot.slane %v16, 4
  %v234 = vsel %vm47, %v231, %v233
  %v235 = vrot.slane %v17, 4
  %v236 = vsel %vm47, %v233, %v235
  %v237 = vrot.slane %v18, 4
  %v238 = vsel %vm47, %v235, %v237
  %v239 = vsel %vm38, %v232, 0
  %v241 = vsel %vm38, %v234, 0
  %v243 = vsel %vm38, %v236, 0
  %v245 = vsel %vm38, %v238, 0
  %v248 = vsel %vm47, %v20, 0
  %250 = vmatprep.subr.mxu0 0.0
  %251 = vmatpush1.msra.mxu0 %v248
  %252 = vmatprep.subr.mxu0 0.0
  %253 = vmatpush1.msra.mxu0 0.0
  %254 = vmatprep.subr.mxu0 0.0
  %255 = vmatpush1.msra.mxu0 0.0
  %256 = vmatprep.subr.mxu0 0.0
  %257 = vmatpush1.msra.mxu0 0.0
  %258 = vmatprep.subr.mxu0 0.0
  %259 = vmatpush1.msra.mxu0 0.0
  %260 = vmatprep.subr.mxu0 0.0
  %261 = vmatpush1.msra.mxu0 0.0
  %262 = vmatprep.subr.mxu0 0.0
  %263 = vmatpush1.msra.mxu0 0.0
  %264 = vmatprep.subr.mxu0 0.0
  %265 = vmatpush1.msra.mxu0 0.0
  %266 = vmatprep.subr.mxu0 0.0
  %267 = vmatpush1.msra.mxu0 0.0
  %268 = vmatprep.subr.mxu0 0.0
  %269 = vmatpush1.msra.mxu0 0.0
  %270 = vmatprep.subr.mxu0 0.0
  %271 = vmatpush1.msra.mxu0 0.0
  %272 = vmatprep.subr.mxu0 0.0
  %273 = vmatpush1.msra.mxu0 0.0
  %274 = vmatprep.subr.mxu0 0.0
  %275 = vmatpush1.msra.mxu0 0.0
  %276 = vmatprep.subr.mxu0 0.0
  %277 = vmatpush1.msra.mxu0 0.0
  %278 = vmatprep.subr.mxu0 0.0
  %279 = vmatpush1.msra.mxu0 0.0
  %280 = vmatprep.subr.mxu0 0.0
  %281 = vmatpush1.msra.mxu0 0.0
  %282 = vmatprep.subr.mxu0 0.0
  %283 = vmatpush1.msra.mxu0 0.0
  %284 = vmatprep.subr.mxu0 0.0
  %285 = vmatpush1.msra.mxu0 0.0
  %286 = vmatprep.subr.mxu0 0.0
  %287 = vmatpush1.msra.mxu0 0.0
  %288 = vmatprep.subr.mxu0 0.0
  %289 = vmatpush1.msra.mxu0 0.0
  %290 = vmatprep.subr.mxu0 0.0
  %291 = vmatpush1.msra.mxu0 0.0
  %292 = vmatprep.subr.mxu0 0.0
  %293 = vmatpush1.msra.mxu0 0.0
  %294 = vmatprep.subr.mxu0 0.0
  %295 = vmatpush1.msra.mxu0 0.0
  %296 = vmatprep.subr.mxu0 0.0
  %297 = vmatpush1.msra.mxu0 0.0
  %298 = vmatprep.subr.mxu0 0.0
  %299 = vmatpush1.msra.mxu0 0.0
  %300 = vmatprep.subr.mxu0 0.0
  %301 = vmatpush1.msra.mxu0 0.0
  %302 = vmatprep.subr.mxu0 0.0
  %303 = vmatpush1.msra.mxu0 0.0
  %304 = vmatprep.subr.mxu0 0.0
  %305 = vmatpush1.msra.mxu0 0.0
  %306 = vmatprep.subr.mxu0 0.0
  %307 = vmatpush1.msra.mxu0 0.0
  %308 = vmatprep.subr.mxu0 0.0
  %309 = vmatpush1.msra.mxu0 0.0
  %310 = vmatprep.subr.mxu0 0.0
  %311 = vmatpush1.msra.mxu0 0.0
  %312 = vmatprep.subr.mxu0 0.0
  %313 = vmatpush1.msra.mxu0 0.0
  %314 = vmatprep.mubr.f32.mxu0 0.0
  %315 = vmatmul.mubr.f32.gmra.mrb[0].mxu0 %v239
  %v316 = vpop.f32.mrb[0].mxu0
  %v317 = vadd.f32 0.0, %v316
  %v318 = vpop.f32.mrb[0].mxu0
  %319 = vmatprep.mubr.f32.mxu0 0.0
  %320 = vmatmul.mubr.f32.gmra.mrb[0].mxu0 %v241
  %v321 = vpop.f32.mrb[0].mxu0
  %v322 = vadd.f32 0.0, %v321
  %v323 = vpop.f32.mrb[0].mxu0
  %324 = vmatprep.mubr.f32.mxu0 0.0
  %325 = vmatmul.mubr.f32.gmra.mrb[0].mxu0 %v243
  %v326 = vpop.f32.mrb[0].mxu0
  %v327 = vadd.f32 0.0, %v326
  %v328 = vpop.f32.mrb[0].mxu0
  %329 = vmatprep.mubr.f32.mxu0 0.0
  %330 = vmatmul.mubr.f32.gmra.mrb[0].mxu0 %v245
  %v331 = vpop.f32.mrb[0].mxu0
  %v332 = vadd.f32 0.0, %v331
  %v333 = vpop.f32.mrb[0].mxu0
  %334 = vdwg.mxu0
  %v335 = vadd.f32 %v212, %v317
  %v336 = vadd.f32 %v217, %v322
  %v337 = vadd.f32 %v222, %v327
  %v338 = vadd.f32 %v227, %v332
  %v339 = vld [vmem:[%s2] sm:$0x1]
  %v341 = vlaneseq
  %v342 = vshrl.u32 %v341, 7
  %v343 = vsub.s32 0, %v342
  %v344 = vrot.slane %v339, %v343
  %v346 = vadd.f32 %v335, %v344
  %v347 = vadd.f32 %v336, %v344
  %v348 = vadd.f32 %v337, %v344
  %v349 = vadd.f32 %v338, %v344
  %v350 = vmax.f32 %v346, 0.0
  %v351 = vmax.f32 %v347, 0.0
  %v352 = vmax.f32 %v348, 0.0
  %v353 = vmax.f32 %v349, 0.0
  %vm354 = vcmask 64512
  %355 = vst.msk [vmem:[%s3] sm:$0xff] %vm354, %v350
  %356 = vst.msk [vmem:[%s3 + $0x8] sm:$0xff] %vm354, %v351
  %357 = vst.msk [vmem:[%s3 + $0x10] sm:$0xff] %vm354, %v352
  %358 = vst.msk [vmem:[%s3 + $0x18] sm:$0xff] %vm354, %v353
  // Predicated region
  $region14: #{conv_model_no_reduction.1} parent=0 // pred_check
    _
  $region15: #{conv_model_no_reduction.1} parent=0 // pred_check_branch
    %360 = sbr.rel (0) target = $region17
  $region16: #{conv_model_no_reduction.1} parent=0 // pred_region
    _
  $region17: #{conv_model_no_reduction.1} parent=0 // pred_fallthru
    _
  // Predicated region
  $region18: #{conv_model_no_reduction.1} parent=0 // pred_check
    _
  $region19: #{conv_model_no_reduction.1} parent=0 // pred_check_branch
    %362 = sbr.rel (0) target = $region21
  $region20: #{conv_model_no_reduction.1} parent=0 // pred_region
    _
  $region21: #{conv_model_no_reduction.1} parent=0 // pred_fallthru
    _

</llo_original>
